<compile_context>
chip_gen: v6e
topology: v6e:2x2x1
jax: 0.10.0
libtpu: 0.0.40
codegen_flags: <defaults>
</compile_context>

<pallas_src>
import functools
import math

import jax
import jax.numpy as jnp
from jax.experimental import pallas as pl
from jax.experimental.pallas import tpu as pltpu


def _sinusoidal_pos_emb_kernel(t_ref, table_ref, o_ref, *, packing, exact_cos):
    # t_ref:     (TB, packing)        timesteps (packing batch rows per output row)
    # table_ref: (3, packing*dim)     rows: [freq, phase, group-id]
    # o_ref:     (TB, packing*dim)    lane-dense output tile
    t = t_ref[...].astype(jnp.float32)
    tab = table_ref[...].astype(jnp.float32)
    freq = tab[0:1, :]
    phase = tab[1:2, :]

    if packing == 1:
        t_full = t                                      # (TB, 1) broadcasts vs (1, dim)
    else:
        # Expand (TB, packing) -> (TB, packing*dim): lane j takes t[:, j // dim].
        # Done with `packing` (<= 16) unrolled selects on the VPU (idle here).
        group = tab[2:3, :]                             # (1, packing*dim)
        t_full = jnp.zeros((t.shape[0], freq.shape[1]), jnp.float32)
        for gi in range(packing):
            t_full = jnp.where(group == float(gi), t[:, gi:gi + 1], t_full)

    if exact_cos:
        # True cos for the second half (phase > 0 marks cos lanes): exact parity
        # with the reference at large |t*freq|, at 2x transcendental cost.
        arg = t_full * freq
        val = jnp.where(phase > 0.0, jnp.cos(arg), jnp.sin(arg))
    else:
        # cos(x) == sin(x + pi/2): one homogeneous full-width sin stream.
        val = jnp.sin(t_full * freq + phase)

    o_ref[...] = val.astype(o_ref.dtype)


def _round_up(x: int, m: int) -> int:
    return (x + m - 1) // m * m


def _vmem_capacity_bytes() -> int:
    try:
        cap = int(getattr(pltpu.get_tpu_info(), "vmem_capacity_bytes", 0))
        if cap > 0:
            return cap
    except Exception:
        pass
    return 64 << 20  # conservative default (v7x per-TensorCore VMEM)


def sinusoidal_pos_emb(t: jax.Array, dim: int, max_period: float = 10000.0,
                       *, exact_cos: bool = False) -> jax.Array:
    """Pallas equivalent of SinusoidalPosEmb(dim)(t, max_period)."""
    assert t.ndim == 1, "t is expected to be a 1-D tensor of timesteps"
    assert dim % 2 == 0, "dim must be even (torch.cat((sin, cos)) contract)"
    half_dim = dim // 2
    assert half_dim >= 2, "dim must be >= 4 (avoids divide-by-zero in log-freq)"

    B = int(t.shape[0])
    out_dtype = t.dtype if jnp.issubdtype(t.dtype, jnp.floating) else jnp.float32

    # ---- lane packing factor: make the output row a multiple of 128 lanes ----
    if dim < 128:
        g = 128 // math.gcd(dim, 128)
        if g > 16:           # degenerate dims: fall back to unpacked (masked) stores
            g = 1
    else:
        g = 1
    gdim = g * dim

    # ---- hoisted constant tables (XLA constant-folds these) ------------------
    k = jnp.arange(half_dim, dtype=jnp.float32)
    freqs_half = jnp.exp(k * (-math.log(max_period) / (half_dim - 1)))
    freq_row = jnp.tile(jnp.concatenate([freqs_half, freqs_half]), (g,))
    phase_row = jnp.tile(jnp.concatenate(
        [jnp.zeros((half_dim,), jnp.float32),
         jnp.full((half_dim,), math.pi / 2, jnp.float32)]), (g,))
    group_row = jnp.repeat(jnp.arange(g, dtype=jnp.float32), dim)
    table = jnp.stack([freq_row, phase_row, group_row])          # (3, gdim)

    # ---- pack timesteps: g batch rows per packed row; pad only to multiple of g
    rows = -(-B // g)
    padded_B = rows * g
    t_in = t if padded_B == B else jnp.zeros((padded_B,), t.dtype).at[:B].set(t)
    t_in = t_in.reshape(rows, g)

    # ---- VMEM-budget-derived batch tile (generation aware) -------------------
    vmem_bytes = _vmem_capacity_bytes()
    out_row_b = gdim * jnp.dtype(out_dtype).itemsize
    in_row_b = g * jnp.dtype(t_in.dtype).itemsize
    budget = vmem_bytes // 4                      # double-buffered blocks ~ 1/4 of VMEM
    tb = budget // (2 * (out_row_b + in_row_b))
    tb = max(8, min(4096, (tb // 8) * 8))
    if rows >= 16:
        # keep >= 2 grid steps so the "parallel" axis can use both v7x TensorCores
        tb = min(tb, _round_up(-(-rows // 2), 8))
    if rows <= tb:
        tb = rows                                 # single block == full array (legal)
    grid = -(-rows // tb)                         # ragged last block masked by Pallas

    vmem_need = 2 * tb * (out_row_b + in_row_b) + 2 * 3 * gdim * 4 + (1 << 20)
    vmem_limit = min(max(vmem_need, 32 << 20), max(vmem_bytes - (4 << 20), 32 << 20))

    out_packed = pl.pallas_call(
        functools.partial(_sinusoidal_pos_emb_kernel, packing=g, exact_cos=exact_cos),
        out_shape=jax.ShapeDtypeStruct((rows, gdim), out_dtype),
        grid=(grid,),
        in_specs=[
            pl.BlockSpec((tb, g), lambda i: (i, 0)),
            pl.BlockSpec((3, gdim), lambda i: (0, 0)),   # revisited: fetched once
        ],
        out_specs=pl.BlockSpec((tb, gdim), lambda i: (i, 0)),
        compiler_params=pltpu.CompilerParams(
            dimension_semantics=("parallel",),
            vmem_limit_bytes=int(vmem_limit)),
        cost_estimate=pl.CostEstimate(
            flops=2 * rows * gdim,
            transcendentals=(2 if exact_cos else 1) * rows * gdim,
            bytes_accessed=rows * gdim * jnp.dtype(out_dtype).itemsize
                           + padded_B * jnp.dtype(t_in.dtype).itemsize
                           + 3 * gdim * 4),
    )(t_in, table)

    if g == 1:
        return out_packed                         # (B, dim): no padding, no slice copy
    out = out_packed.reshape(padded_B, dim)       # contiguous row-major: free-ish
    return out if padded_B == B else out[:B]      # copy only when B % g != 0


def _reference(t, dim, max_period=10000.0):
    half_dim = dim // 2
    emb = math.log(max_period) / (half_dim - 1)
    emb = jnp.exp(jnp.arange(half_dim, dtype=jnp.float32) * -emb).astype(t.dtype)
    emb = t[:, None] * emb[None, :]
    return jnp.concatenate((jnp.sin(emb), jnp.cos(emb)), axis=-1)


if __name__ == "__main__":
    key = jax.random.PRNGKey(0)
    k1, k2 = jax.random.split(key)

    # Case 1: typical time-embedding config; dim=32 exercises the lane-packing
    # path (g = 4 batch rows per 128-lane output row).
    batch, dim = 8, 32
    t = jax.random.uniform(k1, (batch,), jnp.float32, 0.0, 1000.0)
    out = jax.block_until_ready(sinusoidal_pos_emb(t, dim))
    ref = _reference(t, dim)
    assert out.shape == (batch, dim), out.shape
    assert out.dtype == t.dtype, out.dtype
    # atol 1e-4: cos(x) is computed as sin(x + pi/2); for |x| ~ 1e3 in f32 the
    # argument rounding adds a few e-5 of absolute error.
    assert jnp.allclose(out, ref, atol=1e-4, rtol=1e-5), float(jnp.max(jnp.abs(out - ref)))

    # Case 2: exact-cos variant (true jnp.cos for the second half).
    out_exact = jax.block_until_ready(sinusoidal_pos_emb(t, dim, exact_cos=True))
    assert jnp.allclose(out_exact, ref, atol=1e-4, rtol=1e-5), \
        float(jnp.max(jnp.abs(out_exact - ref)))

    # Case 3: dim >= 128 (no packing) with a ragged batch (not a multiple of 8):
    # no padding, no post-kernel slice, Pallas masks the ragged block.
    batch2, dim2 = 5, 256
    t2 = jax.random.uniform(k2, (batch2,), jnp.float32, 0.0, 1000.0)
    out2 = jax.block_until_ready(sinusoidal_pos_emb(t2, dim2))
    ref2 = _reference(t2, dim2)
    assert out2.shape == (batch2, dim2), out2.shape
    assert jnp.allclose(out2, ref2, atol=1e-4, rtol=1e-5), \
        float(jnp.max(jnp.abs(out2 - ref2)))

    print("KERNEL_OK")
</pallas_src>

<mosaic_0001>
module attributes {stable_mosaic.version = 11 : i64} {
  func.func @_sinusoidal_pos_emb_kernel(%arg0: i32, %arg1: memref<2x4xf32, #tpu.memory_space<vmem>>, %arg2: memref<3x128xf32, #tpu.memory_space<vmem>>, %arg3: memref<2x128xf32, #tpu.memory_space<vmem>>) attributes {dimension_semantics = [#tpu.dimension_semantics<parallel>], iteration_bounds = array<i64: 1>, scalar_prefetch = 0 : i64, scratch_operands = 0 : i64, tpu.core_type = #tpu.core_type<tc>, window_params = [{transform_indices = @transform_0, window_bounds = array<i64: 2, 4>}, {pipeline_mode = #tpu.pipeline_mode<synchronous>, transform_indices = @transform_1, window_bounds = array<i64: 3, 128>}, {transform_indices = @transform_2, window_bounds = array<i64: 2, 128>}]} {
    %c0 = arith.constant 0 : index
    %c0_0 = arith.constant 0 : index
    %0 = vector.load %arg1[%c0, %c0_0] : memref<2x4xf32, #tpu.memory_space<vmem>>, vector<2x4xf32>
    %c0_1 = arith.constant 0 : index
    %c0_2 = arith.constant 0 : index
    %1 = vector.load %arg2[%c0_1, %c0_2] : memref<3x128xf32, #tpu.memory_space<vmem>>, vector<3x128xf32>
    %2 = vector.extract_strided_slice %1 {offsets = [0, 0], sizes = [1, 128], strides = [1, 1]} : vector<3x128xf32> to vector<1x128xf32>
    %3 = vector.extract_strided_slice %1 {offsets = [1, 0], sizes = [1, 128], strides = [1, 1]} : vector<3x128xf32> to vector<1x128xf32>
    %4 = vector.extract_strided_slice %1 {offsets = [2, 0], sizes = [1, 128], strides = [1, 1]} : vector<3x128xf32> to vector<1x128xf32>
    %cst = arith.constant 0.000000e+00 : f32
    %5 = vector.broadcast %cst : f32 to vector<2x128xf32>
    %cst_3 = arith.constant 0.000000e+00 : f32
    %6 = vector.broadcast %cst_3 : f32 to vector<1x128xf32>
    %7 = arith.cmpf oeq, %4, %6 : vector<1x128xf32>
    %8 = vector.extract_strided_slice %0 {offsets = [0, 0], sizes = [2, 1], strides = [1, 1]} : vector<2x4xf32> to vector<2x1xf32>
    %9 = vector.shape_cast %7 : vector<1x128xi1> to vector<1x128xi1>
    %10 = vector.broadcast %9 : vector<1x128xi1> to vector<2x128xi1>
    %11 = vector.shape_cast %8 : vector<2x1xf32> to vector<2x1xf32>
    %12 = vector.broadcast %11 : vector<2x1xf32> to vector<2x128xf32>
    %13 = arith.select %10, %12, %5 : vector<2x128xi1>, vector<2x128xf32>
    %cst_4 = arith.constant 1.000000e+00 : f32
    %14 = vector.broadcast %cst_4 : f32 to vector<1x128xf32>
    %15 = arith.cmpf oeq, %4, %14 : vector<1x128xf32>
    %16 = vector.extract_strided_slice %0 {offsets = [0, 1], sizes = [2, 1], strides = [1, 1]} : vector<2x4xf32> to vector<2x1xf32>
    %17 = vector.shape_cast %15 : vector<1x128xi1> to vector<1x128xi1>
    %18 = vector.broadcast %17 : vector<1x128xi1> to vector<2x128xi1>
    %19 = vector.shape_cast %16 : vector<2x1xf32> to vector<2x1xf32>
    %20 = vector.broadcast %19 : vector<2x1xf32> to vector<2x128xf32>
    %21 = arith.select %18, %20, %13 : vector<2x128xi1>, vector<2x128xf32>
    %cst_5 = arith.constant 2.000000e+00 : f32
    %22 = vector.broadcast %cst_5 : f32 to vector<1x128xf32>
    %23 = arith.cmpf oeq, %4, %22 : vector<1x128xf32>
    %24 = vector.extract_strided_slice %0 {offsets = [0, 2], sizes = [2, 1], strides = [1, 1]} : vector<2x4xf32> to vector<2x1xf32>
    %25 = vector.shape_cast %23 : vector<1x128xi1> to vector<1x128xi1>
    %26 = vector.broadcast %25 : vector<1x128xi1> to vector<2x128xi1>
    %27 = vector.shape_cast %24 : vector<2x1xf32> to vector<2x1xf32>
    %28 = vector.broadcast %27 : vector<2x1xf32> to vector<2x128xf32>
    %29 = arith.select %26, %28, %21 : vector<2x128xi1>, vector<2x128xf32>
    %cst_6 = arith.constant 3.000000e+00 : f32
    %30 = vector.broadcast %cst_6 : f32 to vector<1x128xf32>
    %31 = arith.cmpf oeq, %4, %30 : vector<1x128xf32>
    %32 = vector.extract_strided_slice %0 {offsets = [0, 3], sizes = [2, 1], strides = [1, 1]} : vector<2x4xf32> to vector<2x1xf32>
    %33 = vector.shape_cast %31 : vector<1x128xi1> to vector<1x128xi1>
    %34 = vector.broadcast %33 : vector<1x128xi1> to vector<2x128xi1>
    %35 = vector.shape_cast %32 : vector<2x1xf32> to vector<2x1xf32>
    %36 = vector.broadcast %35 : vector<2x1xf32> to vector<2x128xf32>
    %37 = arith.select %34, %36, %29 : vector<2x128xi1>, vector<2x128xf32>
    %38 = vector.broadcast %2 : vector<1x128xf32> to vector<2x128xf32>
    %39 = arith.mulf %37, %38 : vector<2x128xf32>
    %40 = vector.broadcast %3 : vector<1x128xf32> to vector<2x128xf32>
    %41 = arith.addf %39, %40 : vector<2x128xf32>
    %42 = math.sin %41 : vector<2x128xf32>
    %c0_7 = arith.constant 0 : index
    %c0_8 = arith.constant 0 : index
    %43 = vector.load %arg3[%c0_7, %c0_8] : memref<2x128xf32, #tpu.memory_space<vmem>>, vector<2x128xf32>
    tpu.vector_store %arg3[%c0_7, %c0_8], %42 {strides = array<i32>} : memref<2x128xf32, #tpu.memory_space<vmem>>, vector<2x128xf32>,
    return
  }
  func.func @transform_0(%arg0: i32) -> (i32, i32) {
    %c0_i32 = arith.constant 0 : i32
    %c0_i32_0 = arith.constant 0 : i32
    return %arg0, %c0_i32 : i32, i32
  }
  func.func @transform_1(%arg0: i32) -> (i32, i32) {
    %c0_i32 = arith.constant 0 : i32
    %c0_i32_0 = arith.constant 0 : i32
    %c0_i32_1 = arith.constant 0 : i32
    return %c0_i32, %c0_i32_0 : i32, i32
  }
  func.func @transform_2(%arg0: i32) -> (i32, i32) {
    %c0_i32 = arith.constant 0 : i32
    %c0_i32_0 = arith.constant 0 : i32
    return %arg0, %c0_i32 : i32, i32
  }
}

</mosaic_0001>

<llo_original>
// kernel: tpu_custom_call.1
$region0: #{tpu_custom_call.1}
  #allocation0 [shape = 'u32[]', space=smem, size = 0x4, offset = 0x4, fixed_abs, tag = 'smem constant byte address 0x4 - core index']
  #allocation1 [shape = 'u32[144,128]{1,0:T(1,128)}', space=vmem, size = 0x12000, scoped, tag = 'internal scratch']
  %s0 = inlined_call_operand.hbm [shape: f32[2,4], index: 0, kind: input, shape index: {}]
  %s1 = inlined_call_operand.hbm [shape: f32[3,128], index: 1, kind: input, shape index: {}]
  %s2 = inlined_call_operand.hbm [shape: f32[2,128], index: 2, kind: output, shape index: {}]
  %s3 = sld [smem:[#allocation0]]
  $region26: #{tpu_custom_call.1} parent=0
    _
  %s5 = ssub.s32 1, %s3
  %s6 = scalar_select 0, %s5, %s3
  $region1: #{tpu_custom_call.1} parent=0
    #allocation2 [shape = 'u8[1024]{0}', space=vmem, size = 0x400, scoped, tag = 'input window, operand 0, single buffered']
    #allocation3 [shape = 's32[1]{0}', space=sflag, size = 0x4, scoped, tag = 'scoped memory for tpu_custom_call.1']
    #allocation4 [shape = 's32[1]{0}', space=sflag, size = 0x4, scoped, tag = 'scoped memory for tpu_custom_call.1']
    #allocation5 [shape = 'u8[2048]{0}', space=vmem, size = 0x800, scoped, tag = 'input window, operand 1, single buffered']
    #allocation6 [shape = 's32[1]{0}', space=sflag, size = 0x4, scoped, tag = 'scoped memory for tpu_custom_call.1']
    #allocation7 [shape = 'u8[1024]{0}', space=vmem, size = 0x400, scoped, tag = 'output window, operand 0, single buffered']
    %7 = vsyncpa [#allocation3], 0
    %8 = vsyncpa [#allocation6], 0
    %9 = vsyncpa [#allocation4], 0
    // Predicated region
    $region2: #{tpu_custom_call.1} parent=1 // pred_check
      _
    $region3: #{tpu_custom_call.1} parent=1 // pred_check_branch
      %11 = sbr.rel (0) target = $region5
    $region4: #{tpu_custom_call.1} parent=1 // pred_region
      %s13 = ssub.s32 32, 32
      %14 = vsyncadd [#allocation3], %s13
      %s16 = sshll.u32 [#allocation2], 4
      %s17 = int_to_ptr.vmem [resolvable:$true] %s16
      %19 = dma.hbm_to_vmem [thread:$0]  %s0, 32, %s17, [#allocation3]
    $region5: #{tpu_custom_call.1} parent=1 // pred_fallthru
      _
    // Predicated region
    $region6: #{tpu_custom_call.1} parent=1 // pred_check
      _
    $region7: #{tpu_custom_call.1} parent=1 // pred_check_branch
      %21 = sbr.rel (0) target = $region9
    $region8: #{tpu_custom_call.1} parent=1 // pred_region
      %s23 = ssub.s32 64, 64
      %24 = vsyncadd [#allocation6], %s23
      %s26 = sshll.u32 [#allocation5], 4
      %s27 = int_to_ptr.vmem [resolvable:$true] %s26
      %29 = dma.hbm_to_vmem [thread:$0]  %s1, 64, %s27, [#allocation6]
    $region9: #{tpu_custom_call.1} parent=1 // pred_fallthru
      _
    // Predicated region
    $region10: #{tpu_custom_call.1} parent=1 // pred_check
      _
    $region11: #{tpu_custom_call.1} parent=1 // pred_check_branch
      %31 = sbr.rel (0) target = $region13
    $region12: #{tpu_custom_call.1} parent=1 // pred_region
      %32 = dma.done [#allocation3], 32
    $region13: #{tpu_custom_call.1} parent=1 // pred_fallthru
      _
    // Predicated region
    $region14: #{tpu_custom_call.1} parent=1 // pred_check
      _
    $region15: #{tpu_custom_call.1} parent=1 // pred_check_branch
      %34 = sbr.rel (0) target = $region17
    $region16: #{tpu_custom_call.1} parent=1 // pred_region
      %35 = dma.done [#allocation6], 64
    $region17: #{tpu_custom_call.1} parent=1 // pred_fallthru
      _
    %v36 = vld [vmem:[#allocation2] sm:$0x3]
    %v37 = vld [vmem:[#allocation5] sm:$0x7]
    %vm38 = vcmp.eq.f32.partialorder %v37, 0.0
    %v39 = vsel %vm38, 1, 0
    %v40 = vlaneseq
    %v41 = vshrl.u32 %v40, 7
    %v42 = vsub.s32 2, %v41
    %v43 = vrot.slane %v39, %v42
    %vm44 = vcmp.eq.s32.totalorder %v43, 1
    %46 = vset.pattern.permute.xlu0 0
    %47 = vperm.xlu0 %46, %v36
    %v48 = vpop.permute.xlu0 %47
    %v50 = vsel %vm44, %v48, 0.0
    %vm51 = vcmp.eq.f32.partialorder %v37, 1.0
    %v52 = vsel %vm51, 1, 0
    %v53 = vlaneseq
    %v54 = vshrl.u32 %v53, 7
    %v55 = vsub.s32 2, %v54
    %v56 = vrot.slane %v52, %v55
    %vm57 = vcmp.eq.s32.totalorder %v56, 1
    %58 = vset.pattern.permute.xlu0 1
    %59 = vperm.xlu0 %58, %v36
    %v60 = vpop.permute.xlu0 %59
    %v62 = vsel %vm57, %v60, %v50
    %vm63 = vcmp.eq.f32.partialorder %v37, 2.0
    %v64 = vsel %vm63, 1, 0
    %v65 = vlaneseq
    %v66 = vshrl.u32 %v65, 7
    %v67 = vsub.s32 2, %v66
    %v68 = vrot.slane %v64, %v67
    %vm69 = vcmp.eq.s32.totalorder %v68, 1
    %70 = vset.pattern.permute.xlu0 2
    %71 = vperm.xlu0 %70, %v36
    %v72 = vpop.permute.xlu0 %71
    %v74 = vsel %vm69, %v72, %v62
    %vm75 = vcmp.eq.f32.partialorder %v37, 3.0
    %v76 = vsel %vm75, 1, 0
    %v77 = vlaneseq
    %v78 = vshrl.u32 %v77, 7
    %v79 = vsub.s32 2, %v78
    %v80 = vrot.slane %v76, %v79
    %vm81 = vcmp.eq.s32.totalorder %v80, 1
    %82 = vset.pattern.permute.xlu0 3
    %83 = vperm.xlu0 %82, %v36
    %v84 = vpop.permute.xlu0 %83
    %v86 = vsel %vm81, %v84, %v74
    %v87 = vlaneseq
    %v88 = vshrl.u32 %v87, 7
    %v89 = vsub.s32 0, %v88
    %v90 = vrot.slane %v37, %v89
    %v91 = vmul.f32 %v86, %v90
    %v92 = vlaneseq
    %v93 = vshrl.u32 %v92, 7
    %v94 = vsub.s32 1, %v93
    %v95 = vrot.slane %v37, %v94
    %v96 = vadd.f32 %v91, %v95
    %v97 = vand.u32 2147483647, %v96
    %vm98 = vcmp.le.f32.partialorder %v97, 0.7853982
    %vm99 = vcmp.lt.s32.totalorder %v96, 0
    %v100 = vand.u32 %v96, 2139095040
    %v101 = vshrl.u32 %v100, 23
    %v102 = vsub.s32 %v101, 127
    %v103 = vand.u32 2147483647, %v96
    %v104 = vand.u32 %v103, 8388607
    %v105 = vor.u32 %v104, 8388608
    %v106 = vsub.s32 0, %v105
    %v107 = vadd.s32 %v102, 1
    %vm108 = vcmp.gt.s32.totalorder %v107, 0
    %v109 = vsel %vm108, %v107, 0
    %v110 = vshrl.u32 %v109, 5
    %v111 = vand.u32 %v109, 31
    %v112 = vsub.s32 32, %v111
    %v113 = vshrl.u32 683565275, %v112
    %v114 = vshll.u32 683565275, %v111
    %v115 = vshrl.u32 2475754826, %v112
    %v116 = vor.u32 %v114, %v115
    %v117 = vshll.u32 2475754826, %v111
    %v118 = vshrl.u32 2131351028, %v112
    %v119 = vor.u32 %v117, %v118
    %v120 = vshll.u32 2131351028, %v111
    %v121 = vshrl.u32 2102212464, %v112
    %v122 = vor.u32 %v120, %v121
    %v123 = vshll.u32 2102212464, %v111
    %v124 = vshrl.u32 920167782, %v112
    %v125 = vor.u32 %v123, %v124
    %v126 = vshll.u32 920167782, %v111
    %v127 = vshrl.u32 1326507024, %v112
    %v128 = vor.u32 %v126, %v127
    %vm129 = vcmp.lt.s32.totalorder %v110, 1
    %vm130 = vcmp.lt.s32.totalorder %v110, 2
    %vm131 = vcmp.lt.s32.totalorder %v110, 3
    %vm132 = vcmp.lt.s32.totalorder %v110, 4
    %v133 = vsel %vm129, %v113, %v116
    %v134 = vsel %vm132, %v122, 2102212464
    %v135 = vsel %vm131, %v119, %v134
    %v136 = vsel %vm130, %v133, %v135
    %v137 = vsel %vm129, %v116, %v119
    %v138 = vsel %vm132, %v125, 920167782
    %v139 = vsel %vm131, %v122, %v138
    %v140 = vsel %vm130, %v137, %v139
    %v141 = vsel %vm129, %v119, %v122
    %v142 = vsel %vm132, %v128, 1326507024
    %v143 = vsel %vm131, %v125, %v142
    %v144 = vsel %vm130, %v141, %v143
    %v145 = vshll.u32 %v105, 8
    %v146 = vmul.u32.u64.compose %v145, %v144
    %v147 = vextract.low.u32 %v146
    %v148 = vextract.high.u32 %v146
    %v149 = vmul.u32.u64.compose %v145, %v140
    %v150 = vextract.low.u32 %v149
    %v151 = vextract.high.u32 %v149
    %v152 = vmul.u32 %v145, %v136
    %v153 = vadd.s32 %v148, %v150
    %vm154 = vc.u32 %v148, %v150
    %v155 = vadd.s32 %v151, 1
    %v156 = vsel %vm154, %v155, %v151
    %v157 = vadd.s32 %v152, %v156
    %v158 = vadd.s32 %v157, 536870912
    %v159 = vshrl.u32 %v158, 30
    %v160 = vshll.u32 %v159, 30
    %v161 = vsub.s32 %v157, %v160
    %vm162 = vcmp.lt.s32.totalorder %v161, 0
    %v163 = vsub.s32 0, %v161
    %v164 = vsel %vm162, %v163, %v161
    %v165 = vclz %v164
    %v166 = vsub.s32 %v165, 2
    %vm167 = vcmp.gt.s32.totalorder 0, %v166
    %v168 = vsel %vm167, 0, %v166
    %v169 = vsub.s32 32, %v168
    %v170 = vshll.u32 %v161, %v168
    %v171 = vshrl.u32 %v153, %v169
    %v172 = vor.u32 %v170, %v171
    %v173 = vsub.s32 4294967266, %v168
    %v174 = vadd.s32 %v173, 127
    %v175 = vshll.u32 %v174, 23
    %v176 = vor.u32 4788187, %v175
    %v177 = vand.u32 2147483647, %v176
    %v179 = vcvt.s32.f32 %v172
    %v180 = vmul.f32 %v179, %v177
    %v181 = vxor.u32 %v180, 2147483648
    %v182 = vsel %vm99, %v181, %v180
    %v183 = vsub.s32 4, %v159
    %v184 = vsel %vm99, %v183, %v159
    %v185 = vsel %vm98, %v96, %v182
    %v186 = vsel %vm98, 0, %v184
    %v187 = vcosq.f32.pop %v185
    %v188 = vsinq.f32.pop %v185
    %vm189 = vweird.f32 %v96
    %v190 = vadd.s32 %v186, 3
    %v191 = vand.u32 %v190, 3
    %vm192 = vcmp.lt.s32.totalorder %v191, 2
    %vm193 = vcmp.eq.s32.totalorder %v191, 0
    %v194 = vxor.u32 %v188, 2147483648
    %v195 = vsel %vm193, %v187, %v194
    %vm196 = vcmp.eq.s32.totalorder %v191, 2
    %v197 = vxor.u32 %v187, 2147483648
    %v198 = vsel %vm196, %v197, %v188
    %v199 = vsel %vm192, %v195, %v198
    %v200 = vsel %vm189, nan, %v199
    %201 = vst [vmem:[#allocation7] sm:$0x3] %v200
    // Predicated region
    $region18: #{tpu_custom_call.1} parent=1 // pred_check
      _
    $region19: #{tpu_custom_call.1} parent=1 // pred_check_branch
      %203 = sbr.rel (0) target = $region21
    $region20: #{tpu_custom_call.1} parent=1 // pred_region
      %s205 = ssub.s32 32, 32
      %206 = vsyncadd [#allocation4], %s205
      %s208 = sshll.u32 [#allocation7], 4
      %s209 = int_to_ptr.vmem [resolvable:$true] %s208
      %211 = dma.vmem_to_hbm [thread:$0]  %s209, 32, %s2, [#allocation4]
    $region21: #{tpu_custom_call.1} parent=1 // pred_fallthru
      _
    // Predicated region
    $region22: #{tpu_custom_call.1} parent=1 // pred_check
      _
    $region23: #{tpu_custom_call.1} parent=1 // pred_check_branch
      %213 = sbr.rel (0) target = $region25
    $region24: #{tpu_custom_call.1} parent=1 // pred_region
      %214 = dma.done [#allocation4], 32
    $region25: #{tpu_custom_call.1} parent=1 // pred_fallthru
      _
    %215 = vsyncpa [#allocation3], 1
    %216 = vsyncpa [#allocation6], 1
    %217 = vsyncpa [#allocation4], 1

</llo_original>
